<compile_context>
chip_gen: v5e
topology: v5e:2x2
jax: 0.10.0
libtpu: 0.0.40
codegen_flags: <defaults>
</compile_context>

<pallas_src>
import functools

import jax
import jax.numpy as jnp
from jax.experimental import pallas as pl
from jax.experimental.pallas import tpu as pltpu

# TODO(synk): the wrapped `self.net` is an arbitrary user module in the
# PyTorch code; it is left as identity here (only the quant/dequant stubs
# are modeled).

QMIN = -128.0  # torch.qint8
QMAX = 127.0

_WIDTH = 1024      # lane-dense last dim (multiple of 128)
_MAX_TILE_ROWS = 512  # (512, 1024) f32 tile = 2 MiB; 2x in + 2x out bufs = 8 MiB VMEM


def fake_quant_kernel(params_ref, x_ref, o_ref):
    """Fused quantize (qint8 affine) -> identity net -> dequantize.

    params_ref (SMEM, f32[4]) = [inv_scale, scale, qmin - zp, qmax - zp]
    """
    inv_scale = params_ref[0]
    scale = params_ref[1]
    lo = params_ref[2]
    hi = params_ref[3]
    # clip(round(x/s) + zp, QMIN, QMAX) - zp  ==  clip(round(x/s), QMIN-zp, QMAX-zp)
    q = jnp.clip(jnp.round(x_ref[...] * inv_scale), lo, hi)
    o_ref[...] = q * scale


@functools.partial(jax.jit, static_argnames=("scale", "zero_point"))
def quant_model_forward(x, scale, zero_point):
    """x: f32 NCHW array. scale/zero_point: python floats (observer params)."""
    orig_shape = x.shape
    n = x.size

    # Flatten to a lane-dense 2-D slab [rows, _WIDTH] (elementwise -> layout-free),
    # padding so every grid block is full (no partial-block edge cases).
    flat = x.reshape(-1)
    rows = pl.cdiv(n, _WIDTH)
    tile_r = min(_MAX_TILE_ROWS, rows)           # ==rows (full dim) or multiple of 8
    rows_padded = pl.cdiv(rows, tile_r) * tile_r
    pad = rows_padded * _WIDTH - n
    if pad:
        flat = jnp.pad(flat, (0, pad))
    x2d = flat.reshape(rows_padded, _WIDTH)

    params = jnp.array(
        [1.0 / scale, scale, QMIN - zero_point, QMAX - zero_point],
        dtype=jnp.float32,
    )

    out2d = pl.pallas_call(
        fake_quant_kernel,
        out_shape=jax.ShapeDtypeStruct((rows_padded, _WIDTH), jnp.float32),
        grid=(rows_padded // tile_r,),
        in_specs=[
            pl.BlockSpec(memory_space=pltpu.SMEM),                 # params (scalars)
            pl.BlockSpec((tile_r, _WIDTH), lambda i: (i, 0)),      # x tile
        ],
        out_specs=pl.BlockSpec((tile_r, _WIDTH), lambda i: (i, 0)),
        input_output_aliases={1: 0},                               # reuse x slab buffer
        compiler_params=pltpu.CompilerParams(
            dimension_semantics=("parallel",),
        ),
    )(params, x2d)

    return out2d.reshape(-1)[:n].reshape(orig_shape)


if __name__ == "__main__":
    # Deterministic observer parameters (what a QuantStub's observer would learn).
    SCALE = 0.05
    ZERO_POINT = 0.0

    key = jax.random.PRNGKey(0)
    # Small NCHW input consistent with a typical wrapped conv net.
    x = jax.random.normal(key, (2, 4, 16, 16), dtype=jnp.float32)

    y = quant_model_forward(x, SCALE, ZERO_POINT)
    y = jax.block_until_ready(y)

    # Pure-JAX reference of the same (zp-folded, reciprocal) fake-quant math.
    inv_s = jnp.float32(1.0 / SCALE)
    q_ref = jnp.clip(
        jnp.round(x * inv_s),
        jnp.float32(QMIN - ZERO_POINT),
        jnp.float32(QMAX - ZERO_POINT),
    )
    y_ref = q_ref * jnp.float32(SCALE)

    assert y.shape == x.shape and y.dtype == jnp.float32
    assert jnp.max(jnp.abs(y - y_ref)) < 1e-6

    print("KERNEL_OK")
</pallas_src>

<mosaic_0001>
module attributes {stable_mosaic.version = 11 : i64} {
  func.func @fake_quant_kernel(%arg0: i32, %arg1: memref<4xf32, #tpu.memory_space<smem>>, %arg2: memref<2x1024xf32, #tpu.memory_space<vmem>>, %arg3: memref<2x1024xf32, #tpu.memory_space<vmem>>) attributes {dimension_semantics = [#tpu.dimension_semantics<parallel>], iteration_bounds = array<i64: 1>, scalar_prefetch = 0 : i64, scratch_operands = 0 : i64, tpu.core_type = #tpu.core_type<tc>, window_params = [{transform_indices = @transform_0, window_bounds = array<i64: 4>}, {transform_indices = @transform_1, window_bounds = array<i64: 2, 1024>}, {transform_indices = @transform_2, window_bounds = array<i64: 2, 1024>}]} {
    %c0 = arith.constant 0 : index
    %0 = memref.load %arg1[%c0] : memref<4xf32, #tpu.memory_space<smem>>
    %c1 = arith.constant 1 : index
    %1 = memref.load %arg1[%c1] : memref<4xf32, #tpu.memory_space<smem>>
    %c2 = arith.constant 2 : index
    %2 = memref.load %arg1[%c2] : memref<4xf32, #tpu.memory_space<smem>>
    %c3 = arith.constant 3 : index
    %3 = memref.load %arg1[%c3] : memref<4xf32, #tpu.memory_space<smem>>
    %c0_0 = arith.constant 0 : index
    %c0_1 = arith.constant 0 : index
    %4 = vector.load %arg2[%c0_0, %c0_1] : memref<2x1024xf32, #tpu.memory_space<vmem>>, vector<2x1024xf32>
    %5 = vector.broadcast %0 : f32 to vector<2x1024xf32>
    %6 = arith.mulf %4, %5 : vector<2x1024xf32>
    %7 = math.roundeven %6 : vector<2x1024xf32>
    %8 = vector.broadcast %2 : f32 to vector<2x1024xf32>
    %9 = arith.maximumf %8, %7 : vector<2x1024xf32>
    %10 = vector.broadcast %3 : f32 to vector<2x1024xf32>
    %11 = arith.minimumf %10, %9 : vector<2x1024xf32>
    %12 = vector.broadcast %1 : f32 to vector<2x1024xf32>
    %13 = arith.mulf %11, %12 : vector<2x1024xf32>
    %c0_2 = arith.constant 0 : index
    %c0_3 = arith.constant 0 : index
    %14 = vector.load %arg3[%c0_2, %c0_3] : memref<2x1024xf32, #tpu.memory_space<vmem>>, vector<2x1024xf32>
    tpu.vector_store %arg3[%c0_2, %c0_3], %13 {strides = array<i32>} : memref<2x1024xf32, #tpu.memory_space<vmem>>, vector<2x1024xf32>,
    return
  }
  func.func @transform_0(%arg0: i32) -> i32 {
    %c0_i32 = arith.constant 0 : i32
    %c0_i32_0 = arith.constant 0 : i32
    return %c0_i32 : i32
  }
  func.func @transform_1(%arg0: i32) -> (i32, i32) {
    %c0_i32 = arith.constant 0 : i32
    %c0_i32_0 = arith.constant 0 : i32
    return %arg0, %c0_i32 : i32, i32
  }
  func.func @transform_2(%arg0: i32) -> (i32, i32) {
    %c0_i32 = arith.constant 0 : i32
    %c0_i32_0 = arith.constant 0 : i32
    return %arg0, %c0_i32 : i32, i32
  }
}

</mosaic_0001>

<llo_original>
// kernel: quant_model_forward.1
$region0: #{quant_model_forward.1}
  #allocation0 [shape = 'u32[]', space=smem, size = 0x4, offset = 0x4, fixed_abs, tag = 'smem constant byte address 0x4 - core index']
  #allocation1 [shape = 'u32[72,128]{1,0:T(1,128)}', space=vmem, size = 0x9000, scoped, tag = 'internal scratch']
  %s0 = inlined_call_operand.vmem [shape: f32[4], index: 0, kind: input, shape index: {}]
  %s1 = inlined_call_operand.vmem [shape: f32[2,1024], index: 1, kind: input, shape index: {}, may-alias: {1,2}]
  %s2 = inlined_call_operand.vmem [shape: f32[2,1024], index: 2, kind: output, shape index: {}, may-alias: {1,2}]
  %s3 = sld [smem:[#allocation0]]
  $region22: #{quant_model_forward.1} parent=0
    _
  %s5 = ssub.s32 1, %s3
  %s6 = scalar_select 0, %s5, %s3
  $region1: #{quant_model_forward.1} parent=0
    #allocation2 [shape = 'u8[512]{0}', space=smem, size = 0x200, scoped, tag = 'input window, operand 0, single buffered']
    #allocation3 [shape = 's32[1]{0}', space=sflag, size = 0x4, scoped, tag = 'scoped memory for quant_model_forward.1']
    %7 = vsyncpa [#allocation3], 0
    // Predicated region
    $region2: #{quant_model_forward.1} parent=1 // pred_check
      _
    $region3: #{quant_model_forward.1} parent=1 // pred_check_branch
      %9 = sbr.rel (0) target = $region5
    $region4: #{quant_model_forward.1} parent=1 // pred_region
      %11 = vsyncadd [#allocation3], 0
      %s13 = sshll.u32 %s0, 4
      %s14 = int_to_ptr.vmem [resolvable:$true] %s13
      %16 = dma.vmem_to_smem %s14, 16, [#allocation2], [#allocation3]
    $region5: #{quant_model_forward.1} parent=1 // pred_fallthru
      _
    // Predicated region
    $region6: #{quant_model_forward.1} parent=1 // pred_check
      _
    $region7: #{quant_model_forward.1} parent=1 // pred_check_branch
      %18 = sbr.rel (0) target = $region9
    $region8: #{quant_model_forward.1} parent=1 // pred_region
      _
    $region9: #{quant_model_forward.1} parent=1 // pred_fallthru
      _
    // Predicated region
    $region10: #{quant_model_forward.1} parent=1 // pred_check
      _
    $region11: #{quant_model_forward.1} parent=1 // pred_check_branch
      %20 = sbr.rel (0) target = $region13
    $region12: #{quant_model_forward.1} parent=1 // pred_region
      %22 = dma.done [#allocation3], 16
    $region13: #{quant_model_forward.1} parent=1 // pred_fallthru
      _
    %23 = sfence
    %s24 = sld [smem:[#allocation2]]
    %s25 = sld [smem:[#allocation2 + $0x1]]
    %s26 = sld [smem:[#allocation2 + $0x2]]
    %s27 = sld [smem:[#allocation2 + $0x3]]
    %v28 = vld [vmem:[%s1] sm:$0xff]
    %v29 = vld [vmem:[%s1 + $0x8] sm:$0xff]
    %v30 = vstv %s24
    %v31 = vmul.f32 %v28, %v30
    %v32 = vmul.f32 %v29, %v30
    %v33 = vround.ne.pseudo %v31
    %v34 = vround.ne.pseudo %v32
    %v35 = vstv %s26
    %v36 = vmax.f32 %v35, %v33
    %v37 = vmax.f32 %v35, %v34
    %v38 = vstv %s27
    %v39 = vmin.f32 %v38, %v36
    %v40 = vmin.f32 %v38, %v37
    %v41 = vstv %s25
    %v42 = vmul.f32 %v39, %v41
    %v43 = vmul.f32 %v40, %v41
    %44 = vst [vmem:[%s2] sm:$0xff] %v42
    %45 = vst [vmem:[%s2 + $0x8] sm:$0xff] %v43
    // Predicated region
    $region14: #{quant_model_forward.1} parent=1 // pred_check
      _
    $region15: #{quant_model_forward.1} parent=1 // pred_check_branch
      %47 = sbr.rel (0) target = $region17
    $region16: #{quant_model_forward.1} parent=1 // pred_region
      _
    $region17: #{quant_model_forward.1} parent=1 // pred_fallthru
      _
    // Predicated region
    $region18: #{quant_model_forward.1} parent=1 // pred_check
      _
    $region19: #{quant_model_forward.1} parent=1 // pred_check_branch
      %49 = sbr.rel (0) target = $region21
    $region20: #{quant_model_forward.1} parent=1 // pred_region
      _
    $region21: #{quant_model_forward.1} parent=1 // pred_fallthru
      _
    %50 = vsyncpa [#allocation3], 1

</llo_original>
